<compile_context>
chip_gen: v7x
topology: tpu7x:2x2x1
jax: 0.10.0
libtpu: 0.0.40
codegen_flags: <defaults>
</compile_context>

<pallas_src>
import jax
import jax.numpy as jnp
import numpy as np
from jax.experimental import pallas as pl
from jax.experimental.pallas import tpu as pltpu

NDIM = 8
HID = 50
A_DIM = NDIM * NDIM            # 64
OUT_DIM = A_DIM + NDIM         # 72

PAD = 128                      # every packed block is 128 lanes wide (lane-dense)

# Row offsets of each block inside the packed parameter slab (all multiples of 8).
_R_W1 = 0                      # (NDIM, PAD)   rows   0:8    Linear1 weight (in, out)
_R_W2 = _R_W1 + NDIM           # (PAD,  PAD)   rows   8:136  Linear2 weight
_R_W3 = _R_W2 + PAD            # (PAD,  PAD)   rows 136:264  Linear3 weight
_R_W4 = _R_W3 + PAD            # (PAD,  PAD)   rows 264:392  Linear4 weight (A|B fused)
_R_CONST = _R_W4 + PAD         # (8,    PAD)   rows 392:400  b1,b2,b3,b4,ones-selector
_R_REP = _R_CONST + 8          # (NDIM, PAD)   rows 400:408  y-replication selector
_R_GRP = _R_REP + NDIM         # (PAD,  PAD)   rows 408:536  group-sum selector
SLAB_ROWS = _R_GRP + PAD       # 536 (multiple of 8)


def _round_up(x, m):
    return ((x + m - 1) // m) * m


def _vmem_spec():
    return pl.BlockSpec(memory_space=pltpu.MemorySpace.VMEM)


def odenet_kernel(y_ref, p_ref, out_ref):
    """Fused ODENet forward for a (TM, NDIM) block of states.

    MLP (Linear->ReLU x3, Linear) on zero-padded 128-lane tiles, then the
    per-row affine  out[m, j] = sum_i A[m, j, i] * y[m, i] + B[m, j]
    done reshape-/transpose-free with two constant 0/1 selector matrices
    stored in the parameter slab:
        ytile = y @ REP + ones      (replicates y across 8-lane groups, puts 1s
                                     in lanes 64..71 so B rides along)
        out   = (mat * ytile) @ GRP (group-of-8 lane sums + identity on B)
    """
    y = y_ref[...]                                            # (TM, NDIM)

    consts = p_ref[_R_CONST:_R_CONST + 8, :]                  # (8, PAD)
    b1 = consts[0:1, :]
    b2 = consts[1:2, :]
    b3 = consts[2:3, :]
    b4 = consts[3:4, :]
    ones_b = consts[4:5, :]                                   # 1s in lanes 64..71

    # MLP (weights sliced from the slab right at their use to keep live ranges short).
    h = jnp.maximum(
        jnp.dot(y, p_ref[_R_W1:_R_W1 + NDIM, :],
                preferred_element_type=jnp.float32) + b1, 0.0)
    h = jnp.maximum(
        jnp.dot(h, p_ref[_R_W2:_R_W2 + PAD, :],
                preferred_element_type=jnp.float32) + b2, 0.0)
    h = jnp.maximum(
        jnp.dot(h, p_ref[_R_W3:_R_W3 + PAD, :],
                preferred_element_type=jnp.float32) + b3, 0.0)
    mat = jnp.dot(h, p_ref[_R_W4:_R_W4 + PAD, :],
                  preferred_element_type=jnp.float32) + b4    # (TM, PAD): A|B|0

    # Per-row affine without reshape/transpose (pure MXU + one VPU multiply).
    ytile = jnp.dot(y, p_ref[_R_REP:_R_REP + NDIM, :],
                    preferred_element_type=jnp.float32) + ones_b          # (TM, PAD)
    out_full = jnp.dot(mat * ytile, p_ref[_R_GRP:_R_GRP + PAD, :],
                       preferred_element_type=jnp.float32)                # (TM, PAD)
    out_ref[...] = out_full[:, :NDIM]


def init_params(key, ndim=NDIM, hid=HID):
    """Deterministic init matching nn.init.normal_(std=0.05), bias=0.

    Weights are (in_features, out_features) so every matmul is x @ W + b.
    """
    sizes = [(ndim, hid), (hid, hid), (hid, hid), (hid, ndim * ndim + ndim)]
    params = []
    for fan_in, fan_out in sizes:
        key, sub = jax.random.split(key)
        w = 0.05 * jax.random.normal(sub, (fan_in, fan_out), dtype=jnp.float32)
        b = jnp.zeros((1, fan_out), dtype=jnp.float32)
        params += [w, b]
    return tuple(params)


def prepare_params(raw_params):
    """One-time packing of all weights/biases + selector constants into a single
    tile-aligned (SLAB_ROWS, 128) f32 slab (one kernel input, one DMA).
    Zero padding is exact: padded rows/cols contribute nothing."""
    w1, b1, w2, b2, w3, b3, w4, b4 = (np.asarray(p, dtype=np.float32)
                                      for p in raw_params)

    slab = np.zeros((SLAB_ROWS, PAD), dtype=np.float32)

    # Weights (zero-padded to 128 lanes / 128 in-rows).
    slab[_R_W1:_R_W1 + NDIM, :HID] = w1                       # (8, 50)
    slab[_R_W2:_R_W2 + HID, :HID] = w2                        # (50, 50)
    slab[_R_W3:_R_W3 + HID, :HID] = w3                        # (50, 50)
    slab[_R_W4:_R_W4 + HID, :OUT_DIM] = w4                    # (50, 72) = A-part | B-part

    # Biases + the "ones" row that lets the B-part ride through the selector matmul.
    slab[_R_CONST + 0, :HID] = b1[0]
    slab[_R_CONST + 1, :HID] = b2[0]
    slab[_R_CONST + 2, :HID] = b3[0]
    slab[_R_CONST + 3, :OUT_DIM] = b4[0]
    slab[_R_CONST + 4, A_DIM:OUT_DIM] = 1.0

    # REP: ytile[:, c] = y[:, c % NDIM] for c < 64 (lanes 64..127 zero).
    for c in range(A_DIM):
        slab[_R_REP + (c % NDIM), c] = 1.0

    # GRP: group-of-8 lane sum for the A-part, identity for the B-part.
    for c in range(A_DIM):
        slab[_R_GRP + c, c // NDIM] = 1.0
    for j in range(NDIM):
        slab[_R_GRP + A_DIM + j, j] = 1.0

    return jnp.asarray(slab)


def _cost_estimate(n_rows):
    flops_per_row = 2 * (NDIM * PAD        # y @ W1
                         + 3 * PAD * PAD   # W2, W3, W4
                         + NDIM * PAD      # y @ REP
                         + PAD * PAD)      # (mat*ytile) @ GRP
    bytes_accessed = SLAB_ROWS * PAD * 4 + 2 * n_rows * NDIM * 4
    return pl.CostEstimate(flops=n_rows * flops_per_row,
                           transcendentals=0,
                           bytes_accessed=bytes_accessed)


def odenet_forward(param_slab, t, y):
    """Pallas ODENet.forward(t, y); y is (1, ndim) f32 (PyTorch module semantics).

    NOTE: if this is called once per RHS evaluation inside an ODE solver loop,
    launch/DMA overhead dominates the ~13 KFLOP of compute — batch RK stages /
    states through odenet_forward_batched instead.
    """
    del t  # unused, as in the PyTorch module
    return pl.pallas_call(
        odenet_kernel,
        out_shape=jax.ShapeDtypeStruct((1, NDIM), jnp.float32),
        in_specs=[_vmem_spec(), _vmem_spec()],
        out_specs=_vmem_spec(),
        cost_estimate=_cost_estimate(1),
    )(y, param_slab)


def odenet_forward_batched(param_slab, t, ys, *, tile_m=512):
    """Evaluate the ODE RHS for many independent states in one pallas_call.

    Each row of `ys` gets its own (A, B) — identical to applying the PyTorch
    module to each (1, ndim) state separately.

    * tile_m default is 512 (the kernel is grid-overhead bound; VMEM is a
      non-issue — weights ~268 KB, per-tile I/O a few KB even at TM=4096).
    * Arbitrary batch size is supported: rows are zero-padded up to a tile
      multiple and padded outputs dropped, so tile_m is a pure perf knob.
    * v7x: pick tile_m so ys.shape[0] / tile_m >= 2, so the "parallel" batch
      axis shards across both TensorCores.  v5e/v6e: one grid step is optimal.
    """
    del t
    m = ys.shape[0]
    tile = max(8, min(tile_m, _round_up(m, 8)))
    tile = _round_up(tile, 8)
    m_pad = _round_up(m, tile)
    if m_pad != m:
        ys = jnp.pad(ys, ((0, m_pad - m), (0, 0)))
    grid = (m_pad // tile,)

    out = pl.pallas_call(
        odenet_kernel,
        out_shape=jax.ShapeDtypeStruct((m_pad, NDIM), jnp.float32),
        grid=grid,
        in_specs=[pl.BlockSpec((tile, NDIM), lambda i: (i, 0)),
                  pl.BlockSpec((SLAB_ROWS, PAD), lambda i: (0, 0))],  # VMEM-resident weights
        out_specs=pl.BlockSpec((tile, NDIM), lambda i: (i, 0)),
        compiler_params=pltpu.CompilerParams(dimension_semantics=("parallel",)),
        cost_estimate=_cost_estimate(m_pad),
    )(ys, param_slab)
    return out[:m]


def odenet_forward_ref(raw_params, t, y):
    """Pure-JAX reference, mirroring the PyTorch math exactly."""
    del t
    w1, b1, w2, b2, w3, b3, w4, b4 = raw_params
    h = jnp.maximum(y @ w1 + b1, 0.0)
    h = jnp.maximum(h @ w2 + b2, 0.0)
    h = jnp.maximum(h @ w3 + b3, 0.0)
    mat = (h @ w4 + b4).reshape(-1)
    A = mat[:A_DIM].reshape(NDIM, NDIM)
    B = mat[A_DIM:]
    res = A @ y.T + B[:, None]
    return res.T


if __name__ == "__main__":
    key = jax.random.PRNGKey(0)
    key, pkey, ykey, bkey, ckey = jax.random.split(key, 5)

    raw = init_params(pkey)
    slab = prepare_params(raw)
    t = jnp.float32(0.0)

    # --- single-state forward (exact PyTorch forward semantics, y is (1, ndim)) ---
    y = jax.random.normal(ykey, (1, NDIM), dtype=jnp.float32)
    out = jax.block_until_ready(odenet_forward(slab, t, y))
    ref = odenet_forward_ref(raw, t, y)
    assert out.shape == (1, NDIM), out.shape
    assert jnp.allclose(out, ref, atol=1e-4, rtol=1e-4), (out, ref)

    # --- batched variant, tiny ragged batch (single tile, pads 3 -> 8 rows) ---
    ys_small = jax.random.normal(ckey, (3, NDIM), dtype=jnp.float32)
    outs_small = jax.block_until_ready(odenet_forward_batched(slab, t, ys_small))
    refs_small = jax.vmap(lambda yy: odenet_forward_ref(raw, t, yy[None, :])[0])(ys_small)
    assert outs_small.shape == (3, NDIM), outs_small.shape
    assert jnp.allclose(outs_small, refs_small, atol=1e-4, rtol=1e-4)

    # --- batched variant, non-multiple batch: pads 777 -> 1024, grid = 2 steps ---
    M = 777
    ys = jax.random.normal(bkey, (M, NDIM), dtype=jnp.float32)
    outs = jax.block_until_ready(odenet_forward_batched(slab, t, ys, tile_m=512))
    refs = jax.vmap(lambda yy: odenet_forward_ref(raw, t, yy[None, :])[0])(ys)
    assert outs.shape == (M, NDIM), outs.shape
    assert jnp.allclose(outs, refs, atol=1e-4, rtol=1e-4)

    print("KERNEL_OK")
</pallas_src>

<mosaic_0001>
module attributes {stable_mosaic.version = 11 : i64} {
  func.func @odenet_kernel(%arg0: memref<1x8xf32, #tpu.memory_space<vmem>>, %arg1: memref<536x128xf32, #tpu.memory_space<vmem>>, %arg2: memref<1x8xf32, #tpu.memory_space<vmem>>) attributes {dimension_semantics = [], scalar_prefetch = 0 : i64, scratch_operands = 0 : i64, tpu.core_type = #tpu.core_type<tc>} {
    %c0 = arith.constant 0 : index
    %c0_0 = arith.constant 0 : index
    %0 = vector.load %arg0[%c0, %c0_0] : memref<1x8xf32, #tpu.memory_space<vmem>>, vector<1x8xf32>
    %c392 = arith.constant 392 : index
    %c0_1 = arith.constant 0 : index
    %1 = vector.load %arg1[%c392, %c0_1] : memref<536x128xf32, #tpu.memory_space<vmem>>, vector<8x128xf32>
    %2 = vector.extract_strided_slice %1 {offsets = [0, 0], sizes = [1, 128], strides = [1, 1]} : vector<8x128xf32> to vector<1x128xf32>
    %3 = vector.extract_strided_slice %1 {offsets = [1, 0], sizes = [1, 128], strides = [1, 1]} : vector<8x128xf32> to vector<1x128xf32>
    %4 = vector.extract_strided_slice %1 {offsets = [2, 0], sizes = [1, 128], strides = [1, 1]} : vector<8x128xf32> to vector<1x128xf32>
    %5 = vector.extract_strided_slice %1 {offsets = [3, 0], sizes = [1, 128], strides = [1, 1]} : vector<8x128xf32> to vector<1x128xf32>
    %6 = vector.extract_strided_slice %1 {offsets = [4, 0], sizes = [1, 128], strides = [1, 1]} : vector<8x128xf32> to vector<1x128xf32>
    %c0_2 = arith.constant 0 : index
    %c0_3 = arith.constant 0 : index
    %7 = vector.load %arg1[%c0_2, %c0_3] : memref<536x128xf32, #tpu.memory_space<vmem>>, vector<8x128xf32>
    %cst = arith.constant dense<0.000000e+00> : vector<1x128xf32>
    %8 = tpu.matmul %0, %7, %cst {dimension_numbers = #tpu.dot_dimension_numbers<[1], [0], [0], [1], [0, 0, 1, 1], [], []>} : vector<1x8xf32>, vector<8x128xf32>, vector<1x128xf32> -> vector<1x128xf32>
    %9 = arith.addf %8, %2 : vector<1x128xf32>
    %cst_4 = arith.constant 0.000000e+00 : f32
    %10 = vector.broadcast %cst_4 : f32 to vector<1x128xf32>
    %11 = arith.maximumf %9, %10 : vector<1x128xf32>
    %c8 = arith.constant 8 : index
    %c0_5 = arith.constant 0 : index
    %12 = vector.load %arg1[%c8, %c0_5] : memref<536x128xf32, #tpu.memory_space<vmem>>, vector<128x128xf32>
    %cst_6 = arith.constant dense<0.000000e+00> : vector<1x128xf32>
    %13 = tpu.matmul %11, %12, %cst_6 {dimension_numbers = #tpu.dot_dimension_numbers<[1], [0], [0], [1], [0, 0, 1, 1], [], []>} : vector<1x128xf32>, vector<128x128xf32>, vector<1x128xf32> -> vector<1x128xf32>
    %14 = arith.addf %13, %3 : vector<1x128xf32>
    %cst_7 = arith.constant 0.000000e+00 : f32
    %15 = vector.broadcast %cst_7 : f32 to vector<1x128xf32>
    %16 = arith.maximumf %14, %15 : vector<1x128xf32>
    %c136 = arith.constant 136 : index
    %c0_8 = arith.constant 0 : index
    %17 = vector.load %arg1[%c136, %c0_8] : memref<536x128xf32, #tpu.memory_space<vmem>>, vector<128x128xf32>
    %cst_9 = arith.constant dense<0.000000e+00> : vector<1x128xf32>
    %18 = tpu.matmul %16, %17, %cst_9 {dimension_numbers = #tpu.dot_dimension_numbers<[1], [0], [0], [1], [0, 0, 1, 1], [], []>} : vector<1x128xf32>, vector<128x128xf32>, vector<1x128xf32> -> vector<1x128xf32>
    %19 = arith.addf %18, %4 : vector<1x128xf32>
    %cst_10 = arith.constant 0.000000e+00 : f32
    %20 = vector.broadcast %cst_10 : f32 to vector<1x128xf32>
    %21 = arith.maximumf %19, %20 : vector<1x128xf32>
    %c264 = arith.constant 264 : index
    %c0_11 = arith.constant 0 : index
    %22 = vector.load %arg1[%c264, %c0_11] : memref<536x128xf32, #tpu.memory_space<vmem>>, vector<128x128xf32>
    %cst_12 = arith.constant dense<0.000000e+00> : vector<1x128xf32>
    %23 = tpu.matmul %21, %22, %cst_12 {dimension_numbers = #tpu.dot_dimension_numbers<[1], [0], [0], [1], [0, 0, 1, 1], [], []>} : vector<1x128xf32>, vector<128x128xf32>, vector<1x128xf32> -> vector<1x128xf32>
    %24 = arith.addf %23, %5 : vector<1x128xf32>
    %c400 = arith.constant 400 : index
    %c0_13 = arith.constant 0 : index
    %25 = vector.load %arg1[%c400, %c0_13] : memref<536x128xf32, #tpu.memory_space<vmem>>, vector<8x128xf32>
    %cst_14 = arith.constant dense<0.000000e+00> : vector<1x128xf32>
    %26 = tpu.matmul %0, %25, %cst_14 {dimension_numbers = #tpu.dot_dimension_numbers<[1], [0], [0], [1], [0, 0, 1, 1], [], []>} : vector<1x8xf32>, vector<8x128xf32>, vector<1x128xf32> -> vector<1x128xf32>
    %27 = arith.addf %26, %6 : vector<1x128xf32>
    %28 = arith.mulf %24, %27 : vector<1x128xf32>
    %c408 = arith.constant 408 : index
    %c0_15 = arith.constant 0 : index
    %29 = vector.load %arg1[%c408, %c0_15] : memref<536x128xf32, #tpu.memory_space<vmem>>, vector<128x128xf32>
    %cst_16 = arith.constant dense<0.000000e+00> : vector<1x128xf32>
    %30 = tpu.matmul %28, %29, %cst_16 {dimension_numbers = #tpu.dot_dimension_numbers<[1], [0], [0], [1], [0, 0, 1, 1], [], []>} : vector<1x128xf32>, vector<128x128xf32>, vector<1x128xf32> -> vector<1x128xf32>
    %31 = vector.extract_strided_slice %30 {offsets = [0, 0], sizes = [1, 8], strides = [1, 1]} : vector<1x128xf32> to vector<1x8xf32>
    %c0_17 = arith.constant 0 : index
    %c0_18 = arith.constant 0 : index
    %32 = vector.load %arg2[%c0_17, %c0_18] : memref<1x8xf32, #tpu.memory_space<vmem>>, vector<1x8xf32>
    tpu.vector_store %arg2[%c0_17, %c0_18], %31 {strides = array<i32>} : memref<1x8xf32, #tpu.memory_space<vmem>>, vector<1x8xf32>,
    return
  }
}

</mosaic_0001>

<llo_original>
// kernel: tpu_custom_call.1
$region0: #{tpu_custom_call.1}
  #allocation0 [shape = 'u32[]', space=smem, size = 0x4, offset = 0x4, fixed_abs, tag = 'smem constant byte address 0x4 - core index']
  #allocation1 [shape = 'u32[144,128]{1,0:T(1,128)}', space=vmem, size = 0x12000, scoped, tag = 'internal scratch']
  %s0 = inlined_call_operand.hbm [shape: f32[1,8], index: 0, kind: input, shape index: {}]
  %s1 = inlined_call_operand.hbm [shape: f32[536,128], index: 1, kind: input, shape index: {}]
  %s2 = inlined_call_operand.hbm [shape: f32[1,8], index: 2, kind: output, shape index: {}]
  %s3 = sld [smem:[#allocation0]]
  $region26: #{tpu_custom_call.1} parent=0
    _
  %s5 = ssub.s32 1, %s3
  %s6 = scalar_select 0, %s5, %s3
  $region1: #{tpu_custom_call.1} parent=0
    #allocation2 [shape = 'u8[512]{0}', space=vmem, size = 0x400, scoped, tag = 'input window, operand 0, single buffered']
    #allocation3 [shape = 's32[1]{0}', space=sflag, size = 0x4, scoped, tag = 'scoped memory for tpu_custom_call.1']
    #allocation4 [shape = 's32[1]{0}', space=sflag, size = 0x4, scoped, tag = 'scoped memory for tpu_custom_call.1']
    #allocation5 [shape = 'u8[274432]{0}', space=vmem, size = 0x43000, scoped, tag = 'input window, operand 1, single buffered']
    #allocation6 [shape = 's32[1]{0}', space=sflag, size = 0x4, scoped, tag = 'scoped memory for tpu_custom_call.1']
    #allocation7 [shape = 'u8[512]{0}', space=vmem, size = 0x400, scoped, tag = 'output window, operand 0, single buffered']
    %7 = vsyncpa [#allocation3], 0
    %8 = vsyncpa [#allocation6], 0
    %9 = vsyncpa [#allocation4], 0
    // Predicated region
    $region2: #{tpu_custom_call.1} parent=1 // pred_check
      _
    $region3: #{tpu_custom_call.1} parent=1 // pred_check_branch
      %11 = sbr.rel (0) target = $region5
    $region4: #{tpu_custom_call.1} parent=1 // pred_region
      %s13 = ssub.s32 16, 16
      %14 = vsyncadd [#allocation3], %s13
      %s16 = sshll.u32 [#allocation2], 4
      %s17 = int_to_ptr.vmem [resolvable:$true] %s16
      %19 = dma.hbm_to_vmem [thread:$0]  %s0, 16, %s17, [#allocation3]
    $region5: #{tpu_custom_call.1} parent=1 // pred_fallthru
      _
    // Predicated region
    $region6: #{tpu_custom_call.1} parent=1 // pred_check
      _
    $region7: #{tpu_custom_call.1} parent=1 // pred_check_branch
      %21 = sbr.rel (0) target = $region9
    $region8: #{tpu_custom_call.1} parent=1 // pred_region
      %s23 = ssub.s32 8576, 8576
      %24 = vsyncadd [#allocation6], %s23
      %s25 = sshll.u32 [#allocation5], 4
      %s26 = int_to_ptr.vmem [resolvable:$true] %s25
      %31 = dma.hbm_to_vmem [thread:$0]  %s1, 8576, %s26, [#allocation6], 128, 128, 8
    $region9: #{tpu_custom_call.1} parent=1 // pred_fallthru
      _
    // Predicated region
    $region10: #{tpu_custom_call.1} parent=1 // pred_check
      _
    $region11: #{tpu_custom_call.1} parent=1 // pred_check_branch
      %33 = sbr.rel (0) target = $region13
    $region12: #{tpu_custom_call.1} parent=1 // pred_region
      %34 = dma.done [#allocation3], 16
    $region13: #{tpu_custom_call.1} parent=1 // pred_fallthru
      _
    // Predicated region
    $region14: #{tpu_custom_call.1} parent=1 // pred_check
      _
    $region15: #{tpu_custom_call.1} parent=1 // pred_check_branch
      %36 = sbr.rel (0) target = $region17
    $region16: #{tpu_custom_call.1} parent=1 // pred_region
      %37 = dma.done [#allocation6], 8576
    $region17: #{tpu_custom_call.1} parent=1 // pred_fallthru
      _
    %v38 = vld [vmem:[#allocation2] sm:$0x1]
    %v39 = vld [vmem:[#allocation5 + $0x188] sm:$0xff]
    %v40 = vld [vmem:[#allocation5] sm:$0xff]
    %vm41 = vcmask 64512
    %v43 = vsel %vm41, %v38, 0
    %45 = vmatprep.subr.mxu0 0.0
    %46 = vmatpush1.msra.mxu0 %v40
    %47 = vmatprep.subr.mxu0 0.0
    %48 = vmatpush1.msra.mxu0 0.0
    %49 = vmatprep.subr.mxu0 0.0
    %50 = vmatpush1.msra.mxu0 0.0
    %51 = vmatprep.subr.mxu0 0.0
    %52 = vmatpush1.msra.mxu0 0.0
    %53 = vmatprep.subr.mxu0 0.0
    %54 = vmatpush1.msra.mxu0 0.0
    %55 = vmatprep.subr.mxu0 0.0
    %56 = vmatpush1.msra.mxu0 0.0
    %57 = vmatprep.subr.mxu0 0.0
    %58 = vmatpush1.msra.mxu0 0.0
    %59 = vmatprep.subr.mxu0 0.0
    %60 = vmatpush1.msra.mxu0 0.0
    %61 = vmatprep.subr.mxu0 0.0
    %62 = vmatpush1.msra.mxu0 0.0
    %63 = vmatprep.subr.mxu0 0.0
    %64 = vmatpush1.msra.mxu0 0.0
    %65 = vmatprep.subr.mxu0 0.0
    %66 = vmatpush1.msra.mxu0 0.0
    %67 = vmatprep.subr.mxu0 0.0
    %68 = vmatpush1.msra.mxu0 0.0
    %69 = vmatprep.subr.mxu0 0.0
    %70 = vmatpush1.msra.mxu0 0.0
    %71 = vmatprep.subr.mxu0 0.0
    %72 = vmatpush1.msra.mxu0 0.0
    %73 = vmatprep.subr.mxu0 0.0
    %74 = vmatpush1.msra.mxu0 0.0
    %75 = vmatprep.subr.mxu0 0.0
    %76 = vmatpush1.msra.mxu0 0.0
    %77 = vmatprep.subr.mxu0 0.0
    %78 = vmatpush1.msra.mxu0 0.0
    %79 = vmatprep.subr.mxu0 0.0
    %80 = vmatpush1.msra.mxu0 0.0
    %81 = vmatprep.subr.mxu0 0.0
    %82 = vmatpush1.msra.mxu0 0.0
    %83 = vmatprep.subr.mxu0 0.0
    %84 = vmatpush1.msra.mxu0 0.0
    %85 = vmatprep.subr.mxu0 0.0
    %86 = vmatpush1.msra.mxu0 0.0
    %87 = vmatprep.subr.mxu0 0.0
    %88 = vmatpush1.msra.mxu0 0.0
    %89 = vmatprep.subr.mxu0 0.0
    %90 = vmatpush1.msra.mxu0 0.0
    %91 = vmatprep.subr.mxu0 0.0
    %92 = vmatpush1.msra.mxu0 0.0
    %93 = vmatprep.subr.mxu0 0.0
    %94 = vmatpush1.msra.mxu0 0.0
    %95 = vmatprep.subr.mxu0 0.0
    %96 = vmatpush1.msra.mxu0 0.0
    %97 = vmatprep.subr.mxu0 0.0
    %98 = vmatpush1.msra.mxu0 0.0
    %99 = vmatprep.subr.mxu0 0.0
    %100 = vmatpush1.msra.mxu0 0.0
    %101 = vmatprep.subr.mxu0 0.0
    %102 = vmatpush1.msra.mxu0 0.0
    %103 = vmatprep.subr.mxu0 0.0
    %104 = vmatpush1.msra.mxu0 0.0
    %105 = vmatprep.subr.mxu0 0.0
    %106 = vmatpush1.msra.mxu0 0.0
    %107 = vmatprep.subr.mxu0 0.0
    %108 = vmatpush1.msra.mxu0 0.0
    %109 = vmatprep.mubr.f32.mxu0 0.0
    %110 = vmatmul.mubr.f32.gmra.mrb[0].mxu0 %v43
    %v111 = vpop.f32.mrb[0].mxu0
    %v112 = vadd.f32 %v39, %v111
    %v113 = vpop.f32.mrb[0].mxu0
    %114 = vdwg.mxu0
    %v115 = vmax.f32 %v112, 0.0
    %v116 = vld [vmem:[#allocation5 + $0x8] sm:$0xff]
    %v117 = vld [vmem:[#allocation5 + $0x10] sm:$0xff]
    %v118 = vld [vmem:[#allocation5 + $0x18] sm:$0xff]
    %v119 = vld [vmem:[#allocation5 + $0x20] sm:$0xff]
    %v120 = vld [vmem:[#allocation5 + $0x28] sm:$0xff]
    %v121 = vld [vmem:[#allocation5 + $0x30] sm:$0xff]
    %v122 = vld [vmem:[#allocation5 + $0x38] sm:$0xff]
    %v123 = vld [vmem:[#allocation5 + $0x40] sm:$0xff]
    %v124 = vld [vmem:[#allocation5 + $0x48] sm:$0xff]
    %v125 = vld [vmem:[#allocation5 + $0x50] sm:$0xff]
    %v126 = vld [vmem:[#allocation5 + $0x58] sm:$0xff]
    %v127 = vld [vmem:[#allocation5 + $0x60] sm:$0xff]
    %v128 = vld [vmem:[#allocation5 + $0x68] sm:$0xff]
    %v129 = vld [vmem:[#allocation5 + $0x70] sm:$0xff]
    %v130 = vld [vmem:[#allocation5 + $0x78] sm:$0xff]
    %v131 = vld [vmem:[#allocation5 + $0x80] sm:$0xff]
    %v133 = vrot.slane %v39, 1
    %135 = vmatprep.subr.mxu0 0.0
    %136 = vmatpush1.msra.mxu0 %v116
    %137 = vmatprep.subr.mxu0 0.0
    %138 = vmatpush1.msra.mxu0 %v117
    %139 = vmatprep.subr.mxu0 0.0
    %140 = vmatpush1.msra.mxu0 %v118
    %141 = vmatprep.subr.mxu0 0.0
    %142 = vmatpush1.msra.mxu0 %v119
    %143 = vmatprep.subr.mxu0 0.0
    %144 = vmatpush1.msra.mxu0 %v120
    %145 = vmatprep.subr.mxu0 0.0
    %146 = vmatpush1.msra.mxu0 %v121
    %147 = vmatprep.subr.mxu0 0.0
    %148 = vmatpush1.msra.mxu0 %v122
    %149 = vmatprep.subr.mxu0 0.0
    %150 = vmatpush1.msra.mxu0 %v123
    %151 = vmatprep.subr.mxu0 0.0
    %152 = vmatpush1.msra.mxu0 %v124
    %153 = vmatprep.subr.mxu0 0.0
    %154 = vmatpush1.msra.mxu0 %v125
    %155 = vmatprep.subr.mxu0 0.0
    %156 = vmatpush1.msra.mxu0 %v126
    %157 = vmatprep.subr.mxu0 0.0
    %158 = vmatpush1.msra.mxu0 %v127
    %159 = vmatprep.subr.mxu0 0.0
    %160 = vmatpush1.msra.mxu0 %v128
    %161 = vmatprep.subr.mxu0 0.0
    %162 = vmatpush1.msra.mxu0 %v129
    %163 = vmatprep.subr.mxu0 0.0
    %164 = vmatpush1.msra.mxu0 %v130
    %165 = vmatprep.subr.mxu0 0.0
    %166 = vmatpush1.msra.mxu0 %v131
    %167 = vmatprep.subr.mxu0 0.0
    %168 = vmatpush1.msra.mxu0 0.0
    %169 = vmatprep.subr.mxu0 0.0
    %170 = vmatpush1.msra.mxu0 0.0
    %171 = vmatprep.subr.mxu0 0.0
    %172 = vmatpush1.msra.mxu0 0.0
    %173 = vmatprep.subr.mxu0 0.0
    %174 = vmatpush1.msra.mxu0 0.0
    %175 = vmatprep.subr.mxu0 0.0
    %176 = vmatpush1.msra.mxu0 0.0
    %177 = vmatprep.subr.mxu0 0.0
    %178 = vmatpush1.msra.mxu0 0.0
    %179 = vmatprep.subr.mxu0 0.0
    %180 = vmatpush1.msra.mxu0 0.0
    %181 = vmatprep.subr.mxu0 0.0
    %182 = vmatpush1.msra.mxu0 0.0
    %183 = vmatprep.subr.mxu0 0.0
    %184 = vmatpush1.msra.mxu0 0.0
    %185 = vmatprep.subr.mxu0 0.0
    %186 = vmatpush1.msra.mxu0 0.0
    %187 = vmatprep.subr.mxu0 0.0
    %188 = vmatpush1.msra.mxu0 0.0
    %189 = vmatprep.subr.mxu0 0.0
    %190 = vmatpush1.msra.mxu0 0.0
    %191 = vmatprep.subr.mxu0 0.0
    %192 = vmatpush1.msra.mxu0 0.0
    %193 = vmatprep.subr.mxu0 0.0
    %194 = vmatpush1.msra.mxu0 0.0
    %195 = vmatprep.subr.mxu0 0.0
    %196 = vmatpush1.msra.mxu0 0.0
    %197 = vmatprep.subr.mxu0 0.0
    %198 = vmatpush1.msra.mxu0 0.0
    %199 = vmatprep.mubr.f32.mxu0 0.0
    %200 = vmatmul.mubr.f32.gmra.mrb[0].mxu0 %v115
    %v201 = vpop.f32.mrb[0].mxu0
    %v202 = vadd.f32 %v133, %v201
    %v203 = vpop.f32.mrb[0].mxu0
    %204 = vdwg.mxu0
    %v205 = vmax.f32 %v202, 0.0
    %v206 = vld [vmem:[#allocation5 + $0x88] sm:$0xff]
    %v207 = vld [vmem:[#allocation5 + $0x90] sm:$0xff]
    %v208 = vld [vmem:[#allocation5 + $0x98] sm:$0xff]
    %v209 = vld [vmem:[#allocation5 + $0xa0] sm:$0xff]
    %v210 = vld [vmem:[#allocation5 + $0xa8] sm:$0xff]
    %v211 = vld [vmem:[#allocation5 + $0xb0] sm:$0xff]
    %v212 = vld [vmem:[#allocation5 + $0xb8] sm:$0xff]
    %v213 = vld [vmem:[#allocation5 + $0xc0] sm:$0xff]
    %v214 = vld [vmem:[#allocation5 + $0xc8] sm:$0xff]
    %v215 = vld [vmem:[#allocation5 + $0xd0] sm:$0xff]
    %v216 = vld [vmem:[#allocation5 + $0xd8] sm:$0xff]
    %v217 = vld [vmem:[#allocation5 + $0xe0] sm:$0xff]
    %v218 = vld [vmem:[#allocation5 + $0xe8] sm:$0xff]
    %v219 = vld [vmem:[#allocation5 + $0xf0] sm:$0xff]
    %v220 = vld [vmem:[#allocation5 + $0xf8] sm:$0xff]
    %v221 = vld [vmem:[#allocation5 + $0x100] sm:$0xff]
    %v222 = vrot.slane %v39, 2
    %224 = vmatprep.subr.mxu0 0.0
    %225 = vmatpush1.msra.mxu0 %v206
    %226 = vmatprep.subr.mxu0 0.0
    %227 = vmatpush1.msra.mxu0 %v207
    %228 = vmatprep.subr.mxu0 0.0
    %229 = vmatpush1.msra.mxu0 %v208
    %230 = vmatprep.subr.mxu0 0.0
    %231 = vmatpush1.msra.mxu0 %v209
    %232 = vmatprep.subr.mxu0 0.0
    %233 = vmatpush1.msra.mxu0 %v210
    %234 = vmatprep.subr.mxu0 0.0
    %235 = vmatpush1.msra.mxu0 %v211
    %236 = vmatprep.subr.mxu0 0.0
    %237 = vmatpush1.msra.mxu0 %v212
    %238 = vmatprep.subr.mxu0 0.0
    %239 = vmatpush1.msra.mxu0 %v213
    %240 = vmatprep.subr.mxu0 0.0
    %241 = vmatpush1.msra.mxu0 %v214
    %242 = vmatprep.subr.mxu0 0.0
    %243 = vmatpush1.msra.mxu0 %v215
    %244 = vmatprep.subr.mxu0 0.0
    %245 = vmatpush1.msra.mxu0 %v216
    %246 = vmatprep.subr.mxu0 0.0
    %247 = vmatpush1.msra.mxu0 %v217
    %248 = vmatprep.subr.mxu0 0.0
    %249 = vmatpush1.msra.mxu0 %v218
    %250 = vmatprep.subr.mxu0 0.0
    %251 = vmatpush1.msra.mxu0 %v219
    %252 = vmatprep.subr.mxu0 0.0
    %253 = vmatpush1.msra.mxu0 %v220
    %254 = vmatprep.subr.mxu0 0.0
    %255 = vmatpush1.msra.mxu0 %v221
    %256 = vmatprep.subr.mxu0 0.0
    %257 = vmatpush1.msra.mxu0 0.0
    %258 = vmatprep.subr.mxu0 0.0
    %259 = vmatpush1.msra.mxu0 0.0
    %260 = vmatprep.subr.mxu0 0.0
    %261 = vmatpush1.msra.mxu0 0.0
    %262 = vmatprep.subr.mxu0 0.0
    %263 = vmatpush1.msra.mxu0 0.0
    %264 = vmatprep.subr.mxu0 0.0
    %265 = vmatpush1.msra.mxu0 0.0
    %266 = vmatprep.subr.mxu0 0.0
    %267 = vmatpush1.msra.mxu0 0.0
    %268 = vmatprep.subr.mxu0 0.0
    %269 = vmatpush1.msra.mxu0 0.0
    %270 = vmatprep.subr.mxu0 0.0
    %271 = vmatpush1.msra.mxu0 0.0
    %272 = vmatprep.subr.mxu0 0.0
    %273 = vmatpush1.msra.mxu0 0.0
    %274 = vmatprep.subr.mxu0 0.0
    %275 = vmatpush1.msra.mxu0 0.0
    %276 = vmatprep.subr.mxu0 0.0
    %277 = vmatpush1.msra.mxu0 0.0
    %278 = vmatprep.subr.mxu0 0.0
    %279 = vmatpush1.msra.mxu0 0.0
    %280 = vmatprep.subr.mxu0 0.0
    %281 = vmatpush1.msra.mxu0 0.0
    %282 = vmatprep.subr.mxu0 0.0
    %283 = vmatpush1.msra.mxu0 0.0
    %284 = vmatprep.subr.mxu0 0.0
    %285 = vmatpush1.msra.mxu0 0.0
    %286 = vmatprep.subr.mxu0 0.0
    %287 = vmatpush1.msra.mxu0 0.0
    %288 = vmatprep.mubr.f32.mxu0 0.0
    %289 = vmatmul.mubr.f32.gmra.mrb[0].mxu0 %v205
    %v290 = vpop.f32.mrb[0].mxu0
    %v291 = vadd.f32 %v222, %v290
    %v292 = vpop.f32.mrb[0].mxu0
    %293 = vdwg.mxu0
    %v294 = vmax.f32 %v291, 0.0
    %v295 = vld [vmem:[#allocation5 + $0x108] sm:$0xff]
    %v296 = vld [vmem:[#allocation5 + $0x110] sm:$0xff]
    %v297 = vld [vmem:[#allocation5 + $0x118] sm:$0xff]
    %v298 = vld [vmem:[#allocation5 + $0x120] sm:$0xff]
    %v299 = vld [vmem:[#allocation5 + $0x128] sm:$0xff]
    %v300 = vld [vmem:[#allocation5 + $0x130] sm:$0xff]
    %v301 = vld [vmem:[#allocation5 + $0x138] sm:$0xff]
    %v302 = vld [vmem:[#allocation5 + $0x140] sm:$0xff]
    %v303 = vld [vmem:[#allocation5 + $0x148] sm:$0xff]
    %v304 = vld [vmem:[#allocation5 + $0x150] sm:$0xff]
    %v305 = vld [vmem:[#allocation5 + $0x158] sm:$0xff]
    %v306 = vld [vmem:[#allocation5 + $0x160] sm:$0xff]
    %v307 = vld [vmem:[#allocation5 + $0x168] sm:$0xff]
    %v308 = vld [vmem:[#allocation5 + $0x170] sm:$0xff]
    %v309 = vld [vmem:[#allocation5 + $0x178] sm:$0xff]
    %v310 = vld [vmem:[#allocation5 + $0x180] sm:$0xff]
    %v311 = vrot.slane %v39, 3
    %313 = vmatprep.subr.mxu0 0.0
    %314 = vmatpush1.msra.mxu0 %v295
    %315 = vmatprep.subr.mxu0 0.0
    %316 = vmatpush1.msra.mxu0 %v296
    %317 = vmatprep.subr.mxu0 0.0
    %318 = vmatpush1.msra.mxu0 %v297
    %319 = vmatprep.subr.mxu0 0.0
    %320 = vmatpush1.msra.mxu0 %v298
    %321 = vmatprep.subr.mxu0 0.0
    %322 = vmatpush1.msra.mxu0 %v299
    %323 = vmatprep.subr.mxu0 0.0
    %324 = vmatpush1.msra.mxu0 %v300
    %325 = vmatprep.subr.mxu0 0.0
    %326 = vmatpush1.msra.mxu0 %v301
    %327 = vmatprep.subr.mxu0 0.0
    %328 = vmatpush1.msra.mxu0 %v302
    %329 = vmatprep.subr.mxu0 0.0
    %330 = vmatpush1.msra.mxu0 %v303
    %331 = vmatprep.subr.mxu0 0.0
    %332 = vmatpush1.msra.mxu0 %v304
    %333 = vmatprep.subr.mxu0 0.0
    %334 = vmatpush1.msra.mxu0 %v305
    %335 = vmatprep.subr.mxu0 0.0
    %336 = vmatpush1.msra.mxu0 %v306
    %337 = vmatprep.subr.mxu0 0.0
    %338 = vmatpush1.msra.mxu0 %v307
    %339 = vmatprep.subr.mxu0 0.0
    %340 = vmatpush1.msra.mxu0 %v308
    %341 = vmatprep.subr.mxu0 0.0
    %342 = vmatpush1.msra.mxu0 %v309
    %343 = vmatprep.subr.mxu0 0.0
    %344 = vmatpush1.msra.mxu0 %v310
    %345 = vmatprep.subr.mxu0 0.0
    %346 = vmatpush1.msra.mxu0 0.0
    %347 = vmatprep.subr.mxu0 0.0
    %348 = vmatpush1.msra.mxu0 0.0
    %349 = vmatprep.subr.mxu0 0.0
    %350 = vmatpush1.msra.mxu0 0.0
    %351 = vmatprep.subr.mxu0 0.0
    %352 = vmatpush1.msra.mxu0 0.0
    %353 = vmatprep.subr.mxu0 0.0
    %354 = vmatpush1.msra.mxu0 0.0
    %355 = vmatprep.subr.mxu0 0.0
    %356 = vmatpush1.msra.mxu0 0.0
    %357 = vmatprep.subr.mxu0 0.0
    %358 = vmatpush1.msra.mxu0 0.0
    %359 = vmatprep.subr.mxu0 0.0
    %360 = vmatpush1.msra.mxu0 0.0
    %361 = vmatprep.subr.mxu0 0.0
    %362 = vmatpush1.msra.mxu0 0.0
    %363 = vmatprep.subr.mxu0 0.0
    %364 = vmatpush1.msra.mxu0 0.0
    %365 = vmatprep.subr.mxu0 0.0
    %366 = vmatpush1.msra.mxu0 0.0
    %367 = vmatprep.subr.mxu0 0.0
    %368 = vmatpush1.msra.mxu0 0.0
    %369 = vmatprep.subr.mxu0 0.0
    %370 = vmatpush1.msra.mxu0 0.0
    %371 = vmatprep.subr.mxu0 0.0
    %372 = vmatpush1.msra.mxu0 0.0
    %373 = vmatprep.subr.mxu0 0.0
    %374 = vmatpush1.msra.mxu0 0.0
    %375 = vmatprep.subr.mxu0 0.0
    %376 = vmatpush1.msra.mxu0 0.0
    %377 = vmatprep.mubr.f32.mxu0 0.0
    %378 = vmatmul.mubr.f32.gmra.mrb[0].mxu0 %v294
    %v379 = vpop.f32.mrb[0].mxu0
    %v380 = vadd.f32 %v311, %v379
    %v381 = vpop.f32.mrb[0].mxu0
    %382 = vdwg.mxu0
    %v383 = vld [vmem:[#allocation5 + $0x190] sm:$0xff]
    %v384 = vrot.slane %v39, 4
    %386 = vmatprep.subr.mxu0 0.0
    %387 = vmatpush1.msra.mxu0 %v383
    %388 = vmatprep.subr.mxu0 0.0
    %389 = vmatpush1.msra.mxu0 0.0
    %390 = vmatprep.subr.mxu0 0.0
    %391 = vmatpush1.msra.mxu0 0.0
    %392 = vmatprep.subr.mxu0 0.0
    %393 = vmatpush1.msra.mxu0 0.0
    %394 = vmatprep.subr.mxu0 0.0
    %395 = vmatpush1.msra.mxu0 0.0
    %396 = vmatprep.subr.mxu0 0.0
    %397 = vmatpush1.msra.mxu0 0.0
    %398 = vmatprep.subr.mxu0 0.0
    %399 = vmatpush1.msra.mxu0 0.0
    %400 = vmatprep.subr.mxu0 0.0
    %401 = vmatpush1.msra.mxu0 0.0
    %402 = vmatprep.subr.mxu0 0.0
    %403 = vmatpush1.msra.mxu0 0.0
    %404 = vmatprep.subr.mxu0 0.0
    %405 = vmatpush1.msra.mxu0 0.0
    %406 = vmatprep.subr.mxu0 0.0
    %407 = vmatpush1.msra.mxu0 0.0
    %408 = vmatprep.subr.mxu0 0.0
    %409 = vmatpush1.msra.mxu0 0.0
    %410 = vmatprep.subr.mxu0 0.0
    %411 = vmatpush1.msra.mxu0 0.0
    %412 = vmatprep.subr.mxu0 0.0
    %413 = vmatpush1.msra.mxu0 0.0
    %414 = vmatprep.subr.mxu0 0.0
    %415 = vmatpush1.msra.mxu0 0.0
    %416 = vmatprep.subr.mxu0 0.0
    %417 = vmatpush1.msra.mxu0 0.0
    %418 = vmatprep.subr.mxu0 0.0
    %419 = vmatpush1.msra.mxu0 0.0
    %420 = vmatprep.subr.mxu0 0.0
    %421 = vmatpush1.msra.mxu0 0.0
    %422 = vmatprep.subr.mxu0 0.0
    %423 = vmatpush1.msra.mxu0 0.0
    %424 = vmatprep.subr.mxu0 0.0
    %425 = vmatpush1.msra.mxu0 0.0
    %426 = vmatprep.subr.mxu0 0.0
    %427 = vmatpush1.msra.mxu0 0.0
    %428 = vmatprep.subr.mxu0 0.0
    %429 = vmatpush1.msra.mxu0 0.0
    %430 = vmatprep.subr.mxu0 0.0
    %431 = vmatpush1.msra.mxu0 0.0
    %432 = vmatprep.subr.mxu0 0.0
    %433 = vmatpush1.msra.mxu0 0.0
    %434 = vmatprep.subr.mxu0 0.0
    %435 = vmatpush1.msra.mxu0 0.0
    %436 = vmatprep.subr.mxu0 0.0
    %437 = vmatpush1.msra.mxu0 0.0
    %438 = vmatprep.subr.mxu0 0.0
    %439 = vmatpush1.msra.mxu0 0.0
    %440 = vmatprep.subr.mxu0 0.0
    %441 = vmatpush1.msra.mxu0 0.0
    %442 = vmatprep.subr.mxu0 0.0
    %443 = vmatpush1.msra.mxu0 0.0
    %444 = vmatprep.subr.mxu0 0.0
    %445 = vmatpush1.msra.mxu0 0.0
    %446 = vmatprep.subr.mxu0 0.0
    %447 = vmatpush1.msra.mxu0 0.0
    %448 = vmatprep.subr.mxu0 0.0
    %449 = vmatpush1.msra.mxu0 0.0
    %450 = vmatprep.mubr.f32.mxu0 0.0
    %451 = vmatmul.mubr.f32.gmra.mrb[0].mxu0 %v43
    %v452 = vpop.f32.mrb[0].mxu0
    %v453 = vadd.f32 %v384, %v452
    %v454 = vpop.f32.mrb[0].mxu0
    %455 = vdwg.mxu0
    %v456 = vmul.f32 %v380, %v453
    %v457 = vld [vmem:[#allocation5 + $0x198] sm:$0xff]
    %v458 = vld [vmem:[#allocation5 + $0x1a0] sm:$0xff]
    %v459 = vld [vmem:[#allocation5 + $0x1a8] sm:$0xff]
    %v460 = vld [vmem:[#allocation5 + $0x1b0] sm:$0xff]
    %v461 = vld [vmem:[#allocation5 + $0x1b8] sm:$0xff]
    %v462 = vld [vmem:[#allocation5 + $0x1c0] sm:$0xff]
    %v463 = vld [vmem:[#allocation5 + $0x1c8] sm:$0xff]
    %v464 = vld [vmem:[#allocation5 + $0x1d0] sm:$0xff]
    %v465 = vld [vmem:[#allocation5 + $0x1d8] sm:$0xff]
    %v466 = vld [vmem:[#allocation5 + $0x1e0] sm:$0xff]
    %v467 = vld [vmem:[#allocation5 + $0x1e8] sm:$0xff]
    %v468 = vld [vmem:[#allocation5 + $0x1f0] sm:$0xff]
    %v469 = vld [vmem:[#allocation5 + $0x1f8] sm:$0xff]
    %v470 = vld [vmem:[#allocation5 + $0x200] sm:$0xff]
    %v471 = vld [vmem:[#allocation5 + $0x208] sm:$0xff]
    %v472 = vld [vmem:[#allocation5 + $0x210] sm:$0xff]
    %473 = vmatprep.subr.mxu0 0.0
    %474 = vmatpush1.msra.mxu0 %v457
    %475 = vmatprep.subr.mxu0 0.0
    %476 = vmatpush1.msra.mxu0 %v458
    %477 = vmatprep.subr.mxu0 0.0
    %478 = vmatpush1.msra.mxu0 %v459
    %479 = vmatprep.subr.mxu0 0.0
    %480 = vmatpush1.msra.mxu0 %v460
    %481 = vmatprep.subr.mxu0 0.0
    %482 = vmatpush1.msra.mxu0 %v461
    %483 = vmatprep.subr.mxu0 0.0
    %484 = vmatpush1.msra.mxu0 %v462
    %485 = vmatprep.subr.mxu0 0.0
    %486 = vmatpush1.msra.mxu0 %v463
    %487 = vmatprep.subr.mxu0 0.0
    %488 = vmatpush1.msra.mxu0 %v464
    %489 = vmatprep.subr.mxu0 0.0
    %490 = vmatpush1.msra.mxu0 %v465
    %491 = vmatprep.subr.mxu0 0.0
    %492 = vmatpush1.msra.mxu0 %v466
    %493 = vmatprep.subr.mxu0 0.0
    %494 = vmatpush1.msra.mxu0 %v467
    %495 = vmatprep.subr.mxu0 0.0
    %496 = vmatpush1.msra.mxu0 %v468
    %497 = vmatprep.subr.mxu0 0.0
    %498 = vmatpush1.msra.mxu0 %v469
    %499 = vmatprep.subr.mxu0 0.0
    %500 = vmatpush1.msra.mxu0 %v470
    %501 = vmatprep.subr.mxu0 0.0
    %502 = vmatpush1.msra.mxu0 %v471
    %503 = vmatprep.subr.mxu0 0.0
    %504 = vmatpush1.msra.mxu0 %v472
    %505 = vmatprep.subr.mxu0 0.0
    %506 = vmatpush1.msra.mxu0 0.0
    %507 = vmatprep.subr.mxu0 0.0
    %508 = vmatpush1.msra.mxu0 0.0
    %509 = vmatprep.subr.mxu0 0.0
    %510 = vmatpush1.msra.mxu0 0.0
    %511 = vmatprep.subr.mxu0 0.0
    %512 = vmatpush1.msra.mxu0 0.0
    %513 = vmatprep.subr.mxu0 0.0
    %514 = vmatpush1.msra.mxu0 0.0
    %515 = vmatprep.subr.mxu0 0.0
    %516 = vmatpush1.msra.mxu0 0.0
    %517 = vmatprep.subr.mxu0 0.0
    %518 = vmatpush1.msra.mxu0 0.0
    %519 = vmatprep.subr.mxu0 0.0
    %520 = vmatpush1.msra.mxu0 0.0
    %521 = vmatprep.subr.mxu0 0.0
    %522 = vmatpush1.msra.mxu0 0.0
    %523 = vmatprep.subr.mxu0 0.0
    %524 = vmatpush1.msra.mxu0 0.0
    %525 = vmatprep.subr.mxu0 0.0
    %526 = vmatpush1.msra.mxu0 0.0
    %527 = vmatprep.subr.mxu0 0.0
    %528 = vmatpush1.msra.mxu0 0.0
    %529 = vmatprep.subr.mxu0 0.0
    %530 = vmatpush1.msra.mxu0 0.0
    %531 = vmatprep.subr.mxu0 0.0
    %532 = vmatpush1.msra.mxu0 0.0
    %533 = vmatprep.subr.mxu0 0.0
    %534 = vmatpush1.msra.mxu0 0.0
    %535 = vmatprep.subr.mxu0 0.0
    %536 = vmatpush1.msra.mxu0 0.0
    %537 = vmatprep.mubr.f32.mxu0 0.0
    %538 = vmatmul.mubr.f32.gmra.mrb[0].mxu0 %v456
    %v539 = vpop.f32.mrb[0].mxu0
    %v540 = vadd.f32 0.0, %v539
    %v541 = vpop.f32.mrb[0].mxu0
    %542 = vdwg.mxu0
    %vm543 = vcmask 57344
    %544 = vst.msk [vmem:[#allocation7] sm:$0x1] %vm543, %v540
    // Predicated region
    $region18: #{tpu_custom_call.1} parent=1 // pred_check
      _
    $region19: #{tpu_custom_call.1} parent=1 // pred_check_branch
      %546 = sbr.rel (0) target = $region21
    $region20: #{tpu_custom_call.1} parent=1 // pred_region
      %s548 = ssub.s32 16, 16
      %549 = vsyncadd [#allocation4], %s548
      %s551 = sshll.u32 [#allocation7], 4
      %s552 = int_to_ptr.vmem [resolvable:$true] %s551
      %554 = dma.vmem_to_hbm [thread:$0]  %s552, 16, %s2, [#allocation4]
    $region21: #{tpu_custom_call.1} parent=1 // pred_fallthru
      _
    // Predicated region
    $region22: #{tpu_custom_call.1} parent=1 // pred_check
      _
    $region23: #{tpu_custom_call.1} parent=1 // pred_check_branch
      %556 = sbr.rel (0) target = $region25
    $region24: #{tpu_custom_call.1} parent=1 // pred_region
      %557 = dma.done [#allocation4], 16
    $region25: #{tpu_custom_call.1} parent=1 // pred_fallthru
      _
    %558 = vsyncpa [#allocation3], 1
    %559 = vsyncpa [#allocation6], 1
    %560 = vsyncpa [#allocation4], 1

</llo_original>
